<compile_context>
chip_gen: v7x
topology: tpu7x:2x2x1
jax: 0.10.0
libtpu: 0.0.40
codegen_flags: <defaults>
</compile_context>

<pallas_src>
import math
import functools

import jax
import jax.numpy as jnp
from jax.experimental import pallas as pl
from jax.experimental.pallas import tpu as pltpu


def _round_up(x, m):
    return (x + m - 1) // m * m


def _vmem_budget_bytes():
    """Generation-aware VMEM budget: ~80% of physical per-core VMEM.

    v7x (64 MiB/TC)   -> ~51 MiB  (48-56 MiB recommended headroom)
    v5e/v6e (128 MiB) -> ~102 MiB
    Falls back to the most conservative (v7x) figure if the query is unavailable.
    """
    try:
        cap = int(pltpu.get_tpu_info().vmem_capacity_bytes)
    except Exception:
        cap = 64 * 1024 * 1024
    return int(cap * 0.8)


# ---------------------------------------------------------------------------
# Small-vocab path: one-hot matmul on the MXU with a VMEM-resident table.
# ---------------------------------------------------------------------------
def _onehot_kernel(tok_ref, table_ref, out_ref, *, scale, vocab_pad):
    # tok_ref:   (TN, 1)   int32          block of token ids
    # table_ref: (Vp, Ep)  table dtype    full padded table (grid-invariant)
    # out_ref:   (TN, Ep)  table dtype
    tok = tok_ref[...]                                                   # (TN, 1)
    tn = tok.shape[0]
    ids = jax.lax.broadcasted_iota(jnp.int32, (tn, vocab_pad), 1)
    # Exact 0/1 one-hot (no scale folding -> no bf16 rounding of sqrt(emb_size)).
    onehot = jnp.where(ids == tok, 1.0, 0.0).astype(table_ref.dtype)     # (TN, Vp)
    emb = jnp.dot(onehot, table_ref[...],
                  preferred_element_type=jnp.float32)                    # (TN, Ep) on MXU
    # Scale in f32 on the VPU; its VALU slot is idle while the MXU saturates.
    out_ref[...] = (emb * scale).astype(out_ref.dtype)


def _onehot_path(tok_flat, table, n, vocab_size, e_pad, scale,
                 out_dtype, tbl_item, out_item, sub, budget, block_tokens):
    # MXU contraction (K) dim padded to 256 for the 2x256x256 MXU on v6e/v7x
    # (harmless over-padding on v5e's 128-wide MXU; the one-hot is generated in-kernel).
    v_pad = _round_up(vocab_size, 256)
    if v_pad != table.shape[0]:
        table = jnp.pad(table, ((0, v_pad - table.shape[0]), (0, 0)))

    def footprint(tn):
        return (v_pad * e_pad * tbl_item            # table, single-buffered (Buffered(1))
                + 2 * tn * 4                        # token block, double-buffered
                + 2 * tn * e_pad * out_item         # output block, double-buffered
                + tn * v_pad * (4 + tbl_item)       # one-hot temp (f32 iota/cmp + cast)
                + tn * e_pad * 4)                   # f32 matmul accumulator

    tn = _round_up(block_tokens or 256, 256)        # fill the 256 MXU rows on v6e/v7x
    while tn > sub and footprint(tn) > budget:
        tn //= 2
    tn = max(sub, _round_up(tn, sub))               # keep dtype sublane packing intact
    tn = min(tn, _round_up(max(n, 1), sub))         # don't over-pad tiny inputs

    n_pad = _round_up(max(n, 1), tn)
    if n_pad != n:
        tok_flat = jnp.pad(tok_flat, (0, n_pad - n))   # padded ids hit row 0, sliced off
    tok2d = tok_flat.reshape(n_pad, 1)

    grid = (n_pad // tn,)
    # Limit covers the fallback (double-buffered table) case too; capped at the budget.
    vmem_limit = int(min(budget,
                         max(32 * 1024 * 1024,
                             int(1.25 * (footprint(tn) + v_pad * e_pad * tbl_item))
                             + (2 << 20))))
    cost = pl.CostEstimate(
        flops=2 * n_pad * v_pad * e_pad + n_pad * e_pad,
        transcendentals=0,
        bytes_accessed=n_pad * 4 + v_pad * e_pad * tbl_item + n_pad * e_pad * out_item)

    kernel = functools.partial(_onehot_kernel, scale=scale, vocab_pad=v_pad)

    def call(table_spec):
        return pl.pallas_call(
            kernel,
            out_shape=jax.ShapeDtypeStruct((n_pad, e_pad), out_dtype),
            grid_spec=pltpu.PrefetchScalarGridSpec(
                num_scalar_prefetch=0,
                grid=grid,
                in_specs=[pl.BlockSpec((tn, 1), lambda i: (i, 0)), table_spec],
                out_specs=pl.BlockSpec((tn, e_pad), lambda i: (i, 0)),
            ),
            compiler_params=pltpu.CompilerParams(
                dimension_semantics=("parallel",),   # shard token blocks across TCs
                vmem_limit_bytes=vmem_limit),
            cost_estimate=cost,
        )(tok2d, table)

    # The table's index_map is constant, so it is DMA'd once per core; the default second
    # buffer would be pure VMEM waste (matters most on v7x's 64 MiB/TC).
    try:
        return call(pl.BlockSpec((v_pad, e_pad), lambda i: (0, 0),
                                 pipeline_mode=pl.Buffered(1)))
    except Exception:
        # Fallback for JAX versions without pipeline_mode support on this path.
        return call(pl.BlockSpec((v_pad, e_pad), lambda i: (0, 0)))


# ---------------------------------------------------------------------------
# Primary path: scalar-prefetch DMA row gather (table stays in HBM).
# ---------------------------------------------------------------------------
def _gather_kernel(tok_sref, table_hbm, out_ref, rows_vmem, sem,
                   *, scale, vocab_rows, block_tokens):
    # tok_sref:  (Npad,)  int32 in SMEM (scalar prefetch)
    # table_hbm: (V, Ep)  table dtype, raw HBM ref (memory_space=pl.ANY)
    # out_ref:   (TG, Ep) output block (VMEM)
    # rows_vmem: (TG, Ep) gather landing buffer (VMEM scratch)
    # sem:       (1,)     DMA semaphore
    base = pl.program_id(0) * block_tokens

    def issue(r, carry):
        # Clamp for DMA safety (nn.Embedding would raise on bad ids; documented).
        tok = jnp.clip(tok_sref[base + r], 0, vocab_rows - 1)
        pltpu.make_async_copy(table_hbm.at[pl.ds(tok, 1)],
                              rows_vmem.at[pl.ds(r, 1)],
                              sem.at[0]).start()
        return carry

    jax.lax.fori_loop(0, block_tokens, issue, 0)

    def wait(r, carry):
        # Wait descriptor only needs matching shape + the semaphore.
        pltpu.make_async_copy(table_hbm.at[pl.ds(0, 1)],
                              rows_vmem.at[pl.ds(0, 1)],
                              sem.at[0]).wait()
        return carry

    jax.lax.fori_loop(0, block_tokens, wait, 0)

    out_ref[...] = (rows_vmem[...].astype(jnp.float32) * scale).astype(out_ref.dtype)


def _gather_path(tok_flat, table, n, vocab_size, e_pad, scale,
                 out_dtype, tbl_item, out_item, sub, budget, block_tokens):
    def footprint(tg):
        return (tg * e_pad * tbl_item          # gather landing buffer
                + 2 * tg * e_pad * out_item    # output block, double-buffered
                + tg * e_pad * 4)              # f32 scale temp

    tg = _round_up(block_tokens or 128, sub)
    while tg > sub and footprint(tg) > budget // 2:
        tg //= 2
    tg = max(sub, _round_up(tg, sub))
    tg = min(tg, _round_up(max(n, 1), sub))

    n_pad = _round_up(max(n, 1), tg)
    if n_pad != n:
        tok_flat = jnp.pad(tok_flat, (0, n_pad - n))   # padded ids gather row 0, sliced off

    grid = (n_pad // tg,)
    vmem_limit = int(min(budget, max(32 * 1024 * 1024,
                                     int(1.5 * footprint(tg)) + (2 << 20))))
    cost = pl.CostEstimate(
        flops=n_pad * e_pad,
        transcendentals=0,
        bytes_accessed=n_pad * 4 + n_pad * e_pad * tbl_item + n_pad * e_pad * out_item)

    kernel = functools.partial(_gather_kernel, scale=scale,
                               vocab_rows=vocab_size, block_tokens=tg)

    return pl.pallas_call(
        kernel,
        out_shape=jax.ShapeDtypeStruct((n_pad, e_pad), out_dtype),
        grid_spec=pltpu.PrefetchScalarGridSpec(
            num_scalar_prefetch=1,                          # token ids -> SMEM
            grid=grid,
            in_specs=[pl.BlockSpec(memory_space=pl.ANY)],   # table stays in HBM
            out_specs=pl.BlockSpec((tg, e_pad), lambda i, tok: (i, 0)),
            scratch_shapes=[pltpu.VMEM((tg, e_pad), table.dtype),
                            pltpu.SemaphoreType.DMA((1,))],
        ),
        compiler_params=pltpu.CompilerParams(
            dimension_semantics=("parallel",),
            vmem_limit_bytes=vmem_limit),
        cost_estimate=cost,
    )(tok_flat, table)


# ---------------------------------------------------------------------------
# Public wrapper.
# ---------------------------------------------------------------------------
def token_embedding(tokens, table, *, block_tokens=None, onehot_max_vocab=256):
    """TokenEmbedding forward: table[tokens] * sqrt(emb_size).

    tokens: int array of any shape; table: (vocab_size, emb_size), float32 or bfloat16.
    Out-of-range / negative ids do NOT raise (unlike nn.Embedding): the gather path clamps
    them to [0, vocab_size-1]; the small-vocab one-hot path returns all-zero rows.
    """
    vocab_size, emb_size = table.shape
    scale = float(math.sqrt(emb_size))
    out_dtype = table.dtype
    tbl_item = jnp.dtype(table.dtype).itemsize
    out_item = jnp.dtype(out_dtype).itemsize

    tok_shape = tokens.shape
    tok_flat = tokens.reshape(-1).astype(jnp.int32)        # PyTorch .long()
    n = tok_flat.shape[0]

    # Output lane dim padded to 128 so stores are unmasked lane-dense `vst`.
    e_pad = _round_up(emb_size, 128)
    if e_pad != emb_size:
        table = jnp.pad(table, ((0, 0), (0, e_pad - emb_size)))

    budget = _vmem_budget_bytes()
    sub = 8 * max(1, 4 // tbl_item)     # sublane packing: 8 f32 / 16 bf16 / 32 int8 rows

    # One-hot MXU trick only wins below ~120-330 vocab rows (gen dependent); gather is the
    # primary path everywhere else (and for tables that cannot be VMEM-resident anyway).
    if vocab_size <= onehot_max_vocab:
        out = _onehot_path(tok_flat, table, n, vocab_size, e_pad, scale,
                           out_dtype, tbl_item, out_item, sub, budget, block_tokens)
    else:
        out = _gather_path(tok_flat, table, n, vocab_size, e_pad, scale,
                           out_dtype, tbl_item, out_item, sub, budget, block_tokens)

    out = out[:n, :emb_size]
    return out.reshape(*tok_shape, emb_size)


if __name__ == "__main__":
    key = jax.random.PRNGKey(0)
    k1, k2, k3, k4 = jax.random.split(key, 4)

    # --- Path 1: tiny vocab -> VMEM-resident one-hot MXU path ---
    vocab_size, emb_size, batch, seq = 32, 128, 2, 8
    table = jax.random.normal(k1, (vocab_size, emb_size), dtype=jnp.float32)
    tokens = jax.random.randint(k2, (batch, seq), 0, vocab_size, dtype=jnp.int32)
    out = jax.block_until_ready(token_embedding(tokens, table))
    ref = table[tokens] * math.sqrt(emb_size)
    assert out.shape == (batch, seq, emb_size)
    assert out.dtype == table.dtype
    assert jnp.allclose(out, ref, atol=1e-5, rtol=1e-5)

    # --- Path 2: larger vocab -> scalar-prefetch DMA row-gather path ---
    vocab_size, emb_size, batch, seq = 1024, 256, 2, 7   # seq=7 exercises token padding
    table = jax.random.normal(k3, (vocab_size, emb_size), dtype=jnp.float32)
    tokens = jax.random.randint(k4, (batch, seq), 0, vocab_size, dtype=jnp.int32)
    out = jax.block_until_ready(token_embedding(tokens, table))
    ref = table[tokens] * math.sqrt(emb_size)
    assert out.shape == (batch, seq, emb_size)
    assert out.dtype == table.dtype
    assert jnp.allclose(out, ref, atol=1e-5, rtol=1e-5)

    print("KERNEL_OK")
</pallas_src>

<mosaic_0001>
module attributes {stable_mosaic.version = 11 : i64} {
  func.func @_onehot_kernel(%arg0: i32, %arg1: memref<16x1xi32, #tpu.memory_space<vmem>>, %arg2: memref<256x128xf32, #tpu.memory_space<vmem>>, %arg3: memref<16x128xf32, #tpu.memory_space<vmem>>) attributes {dimension_semantics = [#tpu.dimension_semantics<parallel>], iteration_bounds = array<i64: 1>, scalar_prefetch = 0 : i64, scratch_operands = 0 : i64, tpu.core_type = #tpu.core_type<tc>, window_params = [{transform_indices = @transform_0, window_bounds = array<i64: 16, 1>}, {pipeline_mode = #tpu.pipeline_mode<synchronous>, transform_indices = @transform_1, window_bounds = array<i64: 256, 128>}, {transform_indices = @transform_2, window_bounds = array<i64: 16, 128>}]} {
    %c0 = arith.constant 0 : index
    %c0_0 = arith.constant 0 : index
    %0 = vector.load %arg1[%c0, %c0_0] : memref<16x1xi32, #tpu.memory_space<vmem>>, vector<16x1xi32>
    %1 = tpu.iota {dimensions = array<i32: 1>} : vector<16x256xi32>
    %2 = vector.broadcast %0 : vector<16x1xi32> to vector<16x256xi32>
    %3 = arith.cmpi eq, %1, %2 : vector<16x256xi32>
    %cst = arith.constant 1.000000e+00 : f32
    %cst_1 = arith.constant 0.000000e+00 : f32
    %4 = vector.broadcast %cst : f32 to vector<16x256xf32>
    %5 = vector.broadcast %cst_1 : f32 to vector<16x256xf32>
    %6 = arith.select %3, %4, %5 : vector<16x256xi1>, vector<16x256xf32>
    %c0_2 = arith.constant 0 : index
    %c0_3 = arith.constant 0 : index
    %7 = vector.load %arg2[%c0_2, %c0_3] : memref<256x128xf32, #tpu.memory_space<vmem>>, vector<256x128xf32>
    %cst_4 = arith.constant dense<0.000000e+00> : vector<16x128xf32>
    %8 = tpu.matmul %6, %7, %cst_4 {dimension_numbers = #tpu.dot_dimension_numbers<[1], [0], [0], [1], [0, 0, 1, 1], [], []>} : vector<16x256xf32>, vector<256x128xf32>, vector<16x128xf32> -> vector<16x128xf32>
    %cst_5 = arith.constant 11.3137083 : f32
    %9 = vector.broadcast %cst_5 : f32 to vector<16x128xf32>
    %10 = arith.mulf %8, %9 : vector<16x128xf32>
    %c0_6 = arith.constant 0 : index
    %c0_7 = arith.constant 0 : index
    %11 = vector.load %arg3[%c0_6, %c0_7] : memref<16x128xf32, #tpu.memory_space<vmem>>, vector<16x128xf32>
    tpu.vector_store %arg3[%c0_6, %c0_7], %10 {strides = array<i32>} : memref<16x128xf32, #tpu.memory_space<vmem>>, vector<16x128xf32>,
    return
  }
  func.func @transform_0(%arg0: i32) -> (i32, i32) {
    %c0_i32 = arith.constant 0 : i32
    %c0_i32_0 = arith.constant 0 : i32
    return %arg0, %c0_i32 : i32, i32
  }
  func.func @transform_1(%arg0: i32) -> (i32, i32) {
    %c0_i32 = arith.constant 0 : i32
    %c0_i32_0 = arith.constant 0 : i32
    %c0_i32_1 = arith.constant 0 : i32
    return %c0_i32, %c0_i32_0 : i32, i32
  }
  func.func @transform_2(%arg0: i32) -> (i32, i32) {
    %c0_i32 = arith.constant 0 : i32
    %c0_i32_0 = arith.constant 0 : i32
    return %arg0, %c0_i32 : i32, i32
  }
}

module attributes {stable_mosaic.version = 11 : i64} {
  func.func @_onehot_kernel(%arg0: i32, %arg1: memref<16x1xi32, #tpu.memory_space<vmem>>, %arg2: memref<256x128xf32, #tpu.memory_space<vmem>>, %arg3: memref<16x128xf32, #tpu.memory_space<vmem>>) attributes {dimension_semantics = [#tpu.dimension_semantics<parallel>], iteration_bounds = array<i64: 1>, scalar_prefetch = 0 : i64, scratch_operands = 0 : i64, tpu.core_type = #tpu.core_type<tc>, window_params = [{transform_indices = @transform_0, window_bounds = array<i64: 16, 1>}, {pipeline_mode = #tpu.pipeline_mode<synchronous>, transform_indices = @transform_1, window_bounds = array<i64: 256, 128>}, {transform_indices = @transform_2, window_bounds = array<i64: 16, 128>}]} {
    %c0 = arith.constant 0 : index
    %c0_0 = arith.constant 0 : index
    %0 = vector.load %arg1[%c0, %c0_0] : memref<16x1xi32, #tpu.memory_space<vmem>>, vector<16x1xi32>
    %1 = tpu.iota {dimensions = array<i32: 1>} : vector<16x256xi32>
    %2 = vector.broadcast %0 : vector<16x1xi32> to vector<16x256xi32>
    %3 = arith.cmpi eq, %1, %2 : vector<16x256xi32>
    %cst = arith.constant 1.000000e+00 : f32
    %cst_1 = arith.constant 0.000000e+00 : f32
    %4 = vector.broadcast %cst : f32 to vector<16x256xf32>
    %5 = vector.broadcast %cst_1 : f32 to vector<16x256xf32>
    %6 = arith.select %3, %4, %5 : vector<16x256xi1>, vector<16x256xf32>
    %c0_2 = arith.constant 0 : index
    %c0_3 = arith.constant 0 : index
    %7 = vector.load %arg2[%c0_2, %c0_3] : memref<256x128xf32, #tpu.memory_space<vmem>>, vector<256x128xf32>
    %cst_4 = arith.constant dense<0.000000e+00> : vector<16x128xf32>
    %8 = tpu.matmul %6, %7, %cst_4 {dimension_numbers = #tpu.dot_dimension_numbers<[1], [0], [0], [1], [0, 0, 1, 1], [], []>} : vector<16x256xf32>, vector<256x128xf32>, vector<16x128xf32> -> vector<16x128xf32>
    %cst_5 = arith.constant 11.3137083 : f32
    %9 = vector.broadcast %cst_5 : f32 to vector<16x128xf32>
    %10 = arith.mulf %8, %9 : vector<16x128xf32>
    %c0_6 = arith.constant 0 : index
    %c0_7 = arith.constant 0 : index
    %11 = vector.load %arg3[%c0_6, %c0_7] : memref<16x128xf32, #tpu.memory_space<vmem>>, vector<16x128xf32>
    tpu.vector_store %arg3[%c0_6, %c0_7], %10 {strides = array<i32>} : memref<16x128xf32, #tpu.memory_space<vmem>>, vector<16x128xf32>,
    return
  }
  func.func @transform_0(%arg0: i32) -> (i32, i32) {
    %c0_i32 = arith.constant 0 : i32
    %c0_i32_0 = arith.constant 0 : i32
    return %arg0, %c0_i32 : i32, i32
  }
  func.func @transform_1(%arg0: i32) -> (i32, i32) {
    %c0_i32 = arith.constant 0 : i32
    %c0_i32_0 = arith.constant 0 : i32
    %c0_i32_1 = arith.constant 0 : i32
    return %c0_i32, %c0_i32_0 : i32, i32
  }
  func.func @transform_2(%arg0: i32) -> (i32, i32) {
    %c0_i32 = arith.constant 0 : i32
    %c0_i32_0 = arith.constant 0 : i32
    return %arg0, %c0_i32 : i32, i32
  }
}

</mosaic_0001>

<llo_original>
// kernel: tpu_custom_call.1
$region0: #{tpu_custom_call.1}
  #allocation0 [shape = 'u32[]', space=smem, size = 0x4, offset = 0x4, fixed_abs, tag = 'smem constant byte address 0x4 - core index']
  #allocation1 [shape = 'u32[144,128]{1,0:T(1,128)}', space=vmem, size = 0x12000, scoped, tag = 'internal scratch']
  %s0 = inlined_call_operand.vmem [shape: s32[16,1], index: 0, kind: input, shape index: {}]
  %s1 = inlined_call_operand.hbm [shape: f32[256,128], index: 1, kind: input, shape index: {}]
  %s2 = inlined_call_operand.hbm [shape: f32[16,128], index: 2, kind: output, shape index: {}]
  %s3 = sld [smem:[#allocation0]]
  $region22: #{tpu_custom_call.1} parent=0
    _
  %s5 = ssub.s32 1, %s3
  %s6 = scalar_select 0, %s5, %s3
  $region1: #{tpu_custom_call.1} parent=0
    #allocation2 [shape = 'u8[131072]{0}', space=vmem, size = 0x20000, scoped, tag = 'input window, operand 1, single buffered']
    #allocation3 [shape = 's32[1]{0}', space=sflag, size = 0x4, scoped, tag = 'scoped memory for tpu_custom_call.1']
    #allocation4 [shape = 's32[1]{0}', space=sflag, size = 0x4, scoped, tag = 'scoped memory for tpu_custom_call.1']
    #allocation5 [shape = 'u8[8192]{0}', space=vmem, size = 0x2000, scoped, tag = 'output window, operand 0, single buffered']
    %7 = vsyncpa [#allocation3], 0
    %8 = vsyncpa [#allocation4], 0
    // Predicated region
    $region2: #{tpu_custom_call.1} parent=1 // pred_check
      _
    $region3: #{tpu_custom_call.1} parent=1 // pred_check_branch
      %10 = sbr.rel (0) target = $region5
    $region4: #{tpu_custom_call.1} parent=1 // pred_region
      _
    $region5: #{tpu_custom_call.1} parent=1 // pred_fallthru
      _
    // Predicated region
    $region6: #{tpu_custom_call.1} parent=1 // pred_check
      _
    $region7: #{tpu_custom_call.1} parent=1 // pred_check_branch
      %12 = sbr.rel (0) target = $region9
    $region8: #{tpu_custom_call.1} parent=1 // pred_region
      %s14 = ssub.s32 4096, 4096
      %15 = vsyncadd [#allocation3], %s14
      %s16 = sshll.u32 [#allocation2], 4
      %s17 = int_to_ptr.vmem [resolvable:$true] %s16
      %22 = dma.hbm_to_vmem [thread:$0]  %s1, 4096, %s17, [#allocation3], 128, 128, 8
    $region9: #{tpu_custom_call.1} parent=1 // pred_fallthru
      _
    // Predicated region
    $region10: #{tpu_custom_call.1} parent=1 // pred_check
      _
    $region11: #{tpu_custom_call.1} parent=1 // pred_check_branch
      %24 = sbr.rel (0) target = $region13
    $region12: #{tpu_custom_call.1} parent=1 // pred_region
      %25 = dma.done [#allocation3], 4096
    $region13: #{tpu_custom_call.1} parent=1 // pred_fallthru
      _
    %v26 = vld [vmem:[%s0] sm:$0xff]
    %v27 = vld [vmem:[%s0 + $0x8] sm:$0xff]
    %v28 = vlaneseq
    %v29 = vand.u32 %v28, 127
    %v30 = vadd.s32 %v29, 128
    %31 = vset.pattern.permute.xlu0 0
    %32 = vperm.xlu0 %31, %v26
    %v33 = vpop.permute.xlu0 %32
    %34 = vset.pattern.permute.xlu0 0
    %35 = vperm.xlu0 %34, %v27
    %v36 = vpop.permute.xlu0 %35
    %vm37 = vcmp.eq.s32.totalorder %v29, %v33
    %vm38 = vcmp.eq.s32.totalorder %v30, %v33
    %vm39 = vcmp.eq.s32.totalorder %v29, %v36
    %vm40 = vcmp.eq.s32.totalorder %v30, %v36
    %v41 = vsel %vm37, 1.0, 0.0
    %v42 = vsel %vm38, 1.0, 0.0
    %v43 = vsel %vm39, 1.0, 0.0
    %v44 = vsel %vm40, 1.0, 0.0
    %v45 = vld [vmem:[#allocation2] sm:$0xff]
    %v46 = vld [vmem:[#allocation2 + $0x8] sm:$0xff]
    %v47 = vld [vmem:[#allocation2 + $0x10] sm:$0xff]
    %v48 = vld [vmem:[#allocation2 + $0x18] sm:$0xff]
    %v49 = vld [vmem:[#allocation2 + $0x20] sm:$0xff]
    %v50 = vld [vmem:[#allocation2 + $0x28] sm:$0xff]
    %v51 = vld [vmem:[#allocation2 + $0x30] sm:$0xff]
    %v52 = vld [vmem:[#allocation2 + $0x38] sm:$0xff]
    %v53 = vld [vmem:[#allocation2 + $0x40] sm:$0xff]
    %v54 = vld [vmem:[#allocation2 + $0x48] sm:$0xff]
    %v55 = vld [vmem:[#allocation2 + $0x50] sm:$0xff]
    %v56 = vld [vmem:[#allocation2 + $0x58] sm:$0xff]
    %v57 = vld [vmem:[#allocation2 + $0x60] sm:$0xff]
    %v58 = vld [vmem:[#allocation2 + $0x68] sm:$0xff]
    %v59 = vld [vmem:[#allocation2 + $0x70] sm:$0xff]
    %v60 = vld [vmem:[#allocation2 + $0x78] sm:$0xff]
    %v61 = vld [vmem:[#allocation2 + $0x80] sm:$0xff]
    %v62 = vld [vmem:[#allocation2 + $0x88] sm:$0xff]
    %v63 = vld [vmem:[#allocation2 + $0x90] sm:$0xff]
    %v64 = vld [vmem:[#allocation2 + $0x98] sm:$0xff]
    %v65 = vld [vmem:[#allocation2 + $0xa0] sm:$0xff]
    %v66 = vld [vmem:[#allocation2 + $0xa8] sm:$0xff]
    %v67 = vld [vmem:[#allocation2 + $0xb0] sm:$0xff]
    %v68 = vld [vmem:[#allocation2 + $0xb8] sm:$0xff]
    %v69 = vld [vmem:[#allocation2 + $0xc0] sm:$0xff]
    %v70 = vld [vmem:[#allocation2 + $0xc8] sm:$0xff]
    %v71 = vld [vmem:[#allocation2 + $0xd0] sm:$0xff]
    %v72 = vld [vmem:[#allocation2 + $0xd8] sm:$0xff]
    %v73 = vld [vmem:[#allocation2 + $0xe0] sm:$0xff]
    %v74 = vld [vmem:[#allocation2 + $0xe8] sm:$0xff]
    %v75 = vld [vmem:[#allocation2 + $0xf0] sm:$0xff]
    %v76 = vld [vmem:[#allocation2 + $0xf8] sm:$0xff]
    %77 = vmatprep.subr.mxu0 0.0
    %78 = vmatpush1.msra.mxu0 %v45
    %79 = vmatprep.subr.mxu0 0.0
    %80 = vmatpush1.msra.mxu0 %v46
    %81 = vmatprep.subr.mxu0 0.0
    %82 = vmatpush1.msra.mxu0 %v47
    %83 = vmatprep.subr.mxu0 0.0
    %84 = vmatpush1.msra.mxu0 %v48
    %85 = vmatprep.subr.mxu0 0.0
    %86 = vmatpush1.msra.mxu0 %v49
    %87 = vmatprep.subr.mxu0 0.0
    %88 = vmatpush1.msra.mxu0 %v50
    %89 = vmatprep.subr.mxu0 0.0
    %90 = vmatpush1.msra.mxu0 %v51
    %91 = vmatprep.subr.mxu0 0.0
    %92 = vmatpush1.msra.mxu0 %v52
    %93 = vmatprep.subr.mxu0 0.0
    %94 = vmatpush1.msra.mxu0 %v53
    %95 = vmatprep.subr.mxu0 0.0
    %96 = vmatpush1.msra.mxu0 %v54
    %97 = vmatprep.subr.mxu0 0.0
    %98 = vmatpush1.msra.mxu0 %v55
    %99 = vmatprep.subr.mxu0 0.0
    %100 = vmatpush1.msra.mxu0 %v56
    %101 = vmatprep.subr.mxu0 0.0
    %102 = vmatpush1.msra.mxu0 %v57
    %103 = vmatprep.subr.mxu0 0.0
    %104 = vmatpush1.msra.mxu0 %v58
    %105 = vmatprep.subr.mxu0 0.0
    %106 = vmatpush1.msra.mxu0 %v59
    %107 = vmatprep.subr.mxu0 0.0
    %108 = vmatpush1.msra.mxu0 %v60
    %109 = vmatprep.subr.mxu0 0.0
    %110 = vmatpush1.msra.mxu0 %v61
    %111 = vmatprep.subr.mxu0 0.0
    %112 = vmatpush1.msra.mxu0 %v62
    %113 = vmatprep.subr.mxu0 0.0
    %114 = vmatpush1.msra.mxu0 %v63
    %115 = vmatprep.subr.mxu0 0.0
    %116 = vmatpush1.msra.mxu0 %v64
    %117 = vmatprep.subr.mxu0 0.0
    %118 = vmatpush1.msra.mxu0 %v65
    %119 = vmatprep.subr.mxu0 0.0
    %120 = vmatpush1.msra.mxu0 %v66
    %121 = vmatprep.subr.mxu0 0.0
    %122 = vmatpush1.msra.mxu0 %v67
    %123 = vmatprep.subr.mxu0 0.0
    %124 = vmatpush1.msra.mxu0 %v68
    %125 = vmatprep.subr.mxu0 0.0
    %126 = vmatpush1.msra.mxu0 %v69
    %127 = vmatprep.subr.mxu0 0.0
    %128 = vmatpush1.msra.mxu0 %v70
    %129 = vmatprep.subr.mxu0 0.0
    %130 = vmatpush1.msra.mxu0 %v71
    %131 = vmatprep.subr.mxu0 0.0
    %132 = vmatpush1.msra.mxu0 %v72
    %133 = vmatprep.subr.mxu0 0.0
    %134 = vmatpush1.msra.mxu0 %v73
    %135 = vmatprep.subr.mxu0 0.0
    %136 = vmatpush1.msra.mxu0 %v74
    %137 = vmatprep.subr.mxu0 0.0
    %138 = vmatpush1.msra.mxu0 %v75
    %139 = vmatprep.subr.mxu0 0.0
    %140 = vmatpush1.msra.mxu0 %v76
    %141 = vmatprep.mubr.f32.mxu0 %v42
    %142 = vmatmul.mubr.f32.gmra.mrb[0].mxu0 %v41
    %v143 = vpop.f32.mrb[0].mxu0
    %v144 = vadd.f32 0.0, %v143
    %v145 = vpop.f32.mrb[0].mxu0
    %146 = vmatprep.mubr.f32.mxu0 %v44
    %147 = vmatmul.mubr.f32.gmra.mrb[0].mxu0 %v43
    %v148 = vpop.f32.mrb[0].mxu0
    %v149 = vadd.f32 0.0, %v148
    %v150 = vpop.f32.mrb[0].mxu0
    %151 = vdwg.mxu0
    %v152 = vmul.f32 %v144, 11.313708
    %v153 = vmul.f32 %v149, 11.313708
    %154 = vst [vmem:[#allocation5] sm:$0xff] %v152
    %155 = vst [vmem:[#allocation5 + $0x8] sm:$0xff] %v153
    // Predicated region
    $region14: #{tpu_custom_call.1} parent=1 // pred_check
      _
    $region15: #{tpu_custom_call.1} parent=1 // pred_check_branch
      %157 = sbr.rel (0) target = $region17
    $region16: #{tpu_custom_call.1} parent=1 // pred_region
      %s159 = ssub.s32 256, 256
      %160 = vsyncadd [#allocation4], %s159
      %s161 = sshll.u32 [#allocation5], 4
      %s162 = int_to_ptr.vmem [resolvable:$true] %s161
      %167 = dma.vmem_to_hbm [thread:$0]  %s162, 256, %s2, [#allocation4], 128, 128, 8
    $region17: #{tpu_custom_call.1} parent=1 // pred_fallthru
      _
    // Predicated region
    $region18: #{tpu_custom_call.1} parent=1 // pred_check
      _
    $region19: #{tpu_custom_call.1} parent=1 // pred_check_branch
      %169 = sbr.rel (0) target = $region21
    $region20: #{tpu_custom_call.1} parent=1 // pred_region
      %170 = dma.done [#allocation4], 256
    $region21: #{tpu_custom_call.1} parent=1 // pred_fallthru
      _
    %171 = vsyncpa [#allocation3], 1
    %172 = vsyncpa [#allocation4], 1

// kernel: tpu_custom_call.1
$region0: #{tpu_custom_call.1}
  #allocation0 [shape = 'u32[]', space=smem, size = 0x4, offset = 0x4, fixed_abs, tag = 'smem constant byte address 0x4 - core index']
  #allocation1 [shape = 'u32[144,128]{1,0:T(1,128)}', space=vmem, size = 0x12000, scoped, tag = 'internal scratch']
  %s0 = inlined_call_operand.vmem [shape: s32[16,1], index: 0, kind: input, shape index: {}]
  %s1 = inlined_call_operand.hbm [shape: f32[256,128], index: 1, kind: input, shape index: {}]
  %s2 = inlined_call_operand.hbm [shape: f32[16,128], index: 2, kind: output, shape index: {}]
  %s3 = sld [smem:[#allocation0]]
  $region22: #{tpu_custom_call.1} parent=0
    _
  %s5 = ssub.s32 1, %s3
  %s6 = scalar_select 0, %s5, %s3
  $region1: #{tpu_custom_call.1} parent=0
    #allocation2 [shape = 'u8[131072]{0}', space=vmem, size = 0x20000, scoped, tag = 'input window, operand 1, single buffered']
    #allocation3 [shape = 's32[1]{0}', space=sflag, size = 0x4, scoped, tag = 'scoped memory for tpu_custom_call.1']
    #allocation4 [shape = 's32[1]{0}', space=sflag, size = 0x4, scoped, tag = 'scoped memory for tpu_custom_call.1']
    #allocation5 [shape = 'u8[8192]{0}', space=vmem, size = 0x2000, scoped, tag = 'output window, operand 0, single buffered']
    %7 = vsyncpa [#allocation3], 0
    %8 = vsyncpa [#allocation4], 0
    // Predicated region
    $region2: #{tpu_custom_call.1} parent=1 // pred_check
      _
    $region3: #{tpu_custom_call.1} parent=1 // pred_check_branch
      %10 = sbr.rel (0) target = $region5
    $region4: #{tpu_custom_call.1} parent=1 // pred_region
      _
    $region5: #{tpu_custom_call.1} parent=1 // pred_fallthru
      _
    // Predicated region
    $region6: #{tpu_custom_call.1} parent=1 // pred_check
      _
    $region7: #{tpu_custom_call.1} parent=1 // pred_check_branch
      %12 = sbr.rel (0) target = $region9
    $region8: #{tpu_custom_call.1} parent=1 // pred_region
      %s14 = ssub.s32 4096, 4096
      %15 = vsyncadd [#allocation3], %s14
      %s16 = sshll.u32 [#allocation2], 4
      %s17 = int_to_ptr.vmem [resolvable:$true] %s16
      %22 = dma.hbm_to_vmem [thread:$0]  %s1, 4096, %s17, [#allocation3], 128, 128, 8
    $region9: #{tpu_custom_call.1} parent=1 // pred_fallthru
      _
    // Predicated region
    $region10: #{tpu_custom_call.1} parent=1 // pred_check
      _
    $region11: #{tpu_custom_call.1} parent=1 // pred_check_branch
      %24 = sbr.rel (0) target = $region13
    $region12: #{tpu_custom_call.1} parent=1 // pred_region
      %25 = dma.done [#allocation3], 4096
    $region13: #{tpu_custom_call.1} parent=1 // pred_fallthru
      _
    %v26 = vld [vmem:[%s0] sm:$0xff]
    %v27 = vld [vmem:[%s0 + $0x8] sm:$0xff]
    %v28 = vlaneseq
    %v29 = vand.u32 %v28, 127
    %v30 = vadd.s32 %v29, 128
    %31 = vset.pattern.permute.xlu0 0
    %32 = vperm.xlu0 %31, %v26
    %v33 = vpop.permute.xlu0 %32
    %34 = vset.pattern.permute.xlu0 0
    %35 = vperm.xlu0 %34, %v27
    %v36 = vpop.permute.xlu0 %35
    %vm37 = vcmp.eq.s32.totalorder %v29, %v33
    %vm38 = vcmp.eq.s32.totalorder %v30, %v33
    %vm39 = vcmp.eq.s32.totalorder %v29, %v36
    %vm40 = vcmp.eq.s32.totalorder %v30, %v36
    %v41 = vsel %vm37, 1.0, 0.0
    %v42 = vsel %vm38, 1.0, 0.0
    %v43 = vsel %vm39, 1.0, 0.0
    %v44 = vsel %vm40, 1.0, 0.0
    %v45 = vld [vmem:[#allocation2] sm:$0xff]
    %v46 = vld [vmem:[#allocation2 + $0x8] sm:$0xff]
    %v47 = vld [vmem:[#allocation2 + $0x10] sm:$0xff]
    %v48 = vld [vmem:[#allocation2 + $0x18] sm:$0xff]
    %v49 = vld [vmem:[#allocation2 + $0x20] sm:$0xff]
    %v50 = vld [vmem:[#allocation2 + $0x28] sm:$0xff]
    %v51 = vld [vmem:[#allocation2 + $0x30] sm:$0xff]
    %v52 = vld [vmem:[#allocation2 + $0x38] sm:$0xff]
    %v53 = vld [vmem:[#allocation2 + $0x40] sm:$0xff]
    %v54 = vld [vmem:[#allocation2 + $0x48] sm:$0xff]
    %v55 = vld [vmem:[#allocation2 + $0x50] sm:$0xff]
    %v56 = vld [vmem:[#allocation2 + $0x58] sm:$0xff]
    %v57 = vld [vmem:[#allocation2 + $0x60] sm:$0xff]
    %v58 = vld [vmem:[#allocation2 + $0x68] sm:$0xff]
    %v59 = vld [vmem:[#allocation2 + $0x70] sm:$0xff]
    %v60 = vld [vmem:[#allocation2 + $0x78] sm:$0xff]
    %v61 = vld [vmem:[#allocation2 + $0x80] sm:$0xff]
    %v62 = vld [vmem:[#allocation2 + $0x88] sm:$0xff]
    %v63 = vld [vmem:[#allocation2 + $0x90] sm:$0xff]
    %v64 = vld [vmem:[#allocation2 + $0x98] sm:$0xff]
    %v65 = vld [vmem:[#allocation2 + $0xa0] sm:$0xff]
    %v66 = vld [vmem:[#allocation2 + $0xa8] sm:$0xff]
    %v67 = vld [vmem:[#allocation2 + $0xb0] sm:$0xff]
    %v68 = vld [vmem:[#allocation2 + $0xb8] sm:$0xff]
    %v69 = vld [vmem:[#allocation2 + $0xc0] sm:$0xff]
    %v70 = vld [vmem:[#allocation2 + $0xc8] sm:$0xff]
    %v71 = vld [vmem:[#allocation2 + $0xd0] sm:$0xff]
    %v72 = vld [vmem:[#allocation2 + $0xd8] sm:$0xff]
    %v73 = vld [vmem:[#allocation2 + $0xe0] sm:$0xff]
    %v74 = vld [vmem:[#allocation2 + $0xe8] sm:$0xff]
    %v75 = vld [vmem:[#allocation2 + $0xf0] sm:$0xff]
    %v76 = vld [vmem:[#allocation2 + $0xf8] sm:$0xff]
    %77 = vmatprep.subr.mxu0 0.0
    %78 = vmatpush1.msra.mxu0 %v45
    %79 = vmatprep.subr.mxu0 0.0
    %80 = vmatpush1.msra.mxu0 %v46
    %81 = vmatprep.subr.mxu0 0.0
    %82 = vmatpush1.msra.mxu0 %v47
    %83 = vmatprep.subr.mxu0 0.0
    %84 = vmatpush1.msra.mxu0 %v48
    %85 = vmatprep.subr.mxu0 0.0
    %86 = vmatpush1.msra.mxu0 %v49
    %87 = vmatprep.subr.mxu0 0.0
    %88 = vmatpush1.msra.mxu0 %v50
    %89 = vmatprep.subr.mxu0 0.0
    %90 = vmatpush1.msra.mxu0 %v51
    %91 = vmatprep.subr.mxu0 0.0
    %92 = vmatpush1.msra.mxu0 %v52
    %93 = vmatprep.subr.mxu0 0.0
    %94 = vmatpush1.msra.mxu0 %v53
    %95 = vmatprep.subr.mxu0 0.0
    %96 = vmatpush1.msra.mxu0 %v54
    %97 = vmatprep.subr.mxu0 0.0
    %98 = vmatpush1.msra.mxu0 %v55
    %99 = vmatprep.subr.mxu0 0.0
    %100 = vmatpush1.msra.mxu0 %v56
    %101 = vmatprep.subr.mxu0 0.0
    %102 = vmatpush1.msra.mxu0 %v57
    %103 = vmatprep.subr.mxu0 0.0
    %104 = vmatpush1.msra.mxu0 %v58
    %105 = vmatprep.subr.mxu0 0.0
    %106 = vmatpush1.msra.mxu0 %v59
    %107 = vmatprep.subr.mxu0 0.0
    %108 = vmatpush1.msra.mxu0 %v60
    %109 = vmatprep.subr.mxu0 0.0
    %110 = vmatpush1.msra.mxu0 %v61
    %111 = vmatprep.subr.mxu0 0.0
    %112 = vmatpush1.msra.mxu0 %v62
    %113 = vmatprep.subr.mxu0 0.0
    %114 = vmatpush1.msra.mxu0 %v63
    %115 = vmatprep.subr.mxu0 0.0
    %116 = vmatpush1.msra.mxu0 %v64
    %117 = vmatprep.subr.mxu0 0.0
    %118 = vmatpush1.msra.mxu0 %v65
    %119 = vmatprep.subr.mxu0 0.0
    %120 = vmatpush1.msra.mxu0 %v66
    %121 = vmatprep.subr.mxu0 0.0
    %122 = vmatpush1.msra.mxu0 %v67
    %123 = vmatprep.subr.mxu0 0.0
    %124 = vmatpush1.msra.mxu0 %v68
    %125 = vmatprep.subr.mxu0 0.0
    %126 = vmatpush1.msra.mxu0 %v69
    %127 = vmatprep.subr.mxu0 0.0
    %128 = vmatpush1.msra.mxu0 %v70
    %129 = vmatprep.subr.mxu0 0.0
    %130 = vmatpush1.msra.mxu0 %v71
    %131 = vmatprep.subr.mxu0 0.0
    %132 = vmatpush1.msra.mxu0 %v72
    %133 = vmatprep.subr.mxu0 0.0
    %134 = vmatpush1.msra.mxu0 %v73
    %135 = vmatprep.subr.mxu0 0.0
    %136 = vmatpush1.msra.mxu0 %v74
    %137 = vmatprep.subr.mxu0 0.0
    %138 = vmatpush1.msra.mxu0 %v75
    %139 = vmatprep.subr.mxu0 0.0
    %140 = vmatpush1.msra.mxu0 %v76
    %141 = vmatprep.mubr.f32.mxu0 %v42
    %142 = vmatmul.mubr.f32.gmra.mrb[0].mxu0 %v41
    %v143 = vpop.f32.mrb[0].mxu0
    %v144 = vadd.f32 0.0, %v143
    %v145 = vpop.f32.mrb[0].mxu0
    %146 = vmatprep.mubr.f32.mxu0 %v44
    %147 = vmatmul.mubr.f32.gmra.mrb[0].mxu0 %v43
    %v148 = vpop.f32.mrb[0].mxu0
    %v149 = vadd.f32 0.0, %v148
    %v150 = vpop.f32.mrb[0].mxu0
    %151 = vdwg.mxu0
    %v152 = vmul.f32 %v144, 11.313708
    %v153 = vmul.f32 %v149, 11.313708
    %154 = vst [vmem:[#allocation5] sm:$0xff] %v152
    %155 = vst [vmem:[#allocation5 + $0x8] sm:$0xff] %v153
    // Predicated region
    $region14: #{tpu_custom_call.1} parent=1 // pred_check
      _
    $region15: #{tpu_custom_call.1} parent=1 // pred_check_branch
      %157 = sbr.rel (0) target = $region17
    $region16: #{tpu_custom_call.1} parent=1 // pred_region
      %s159 = ssub.s32 256, 256
      %160 = vsyncadd [#allocation4], %s159
      %s161 = sshll.u32 [#allocation5], 4
      %s162 = int_to_ptr.vmem [resolvable:$true] %s161
      %167 = dma.vmem_to_hbm [thread:$0]  %s162, 256, %s2, [#allocation4], 128, 128, 8
    $region17: #{tpu_custom_call.1} parent=1 // pred_fallthru
      _
    // Predicated region
    $region18: #{tpu_custom_call.1} parent=1 // pred_check
      _
    $region19: #{tpu_custom_call.1} parent=1 // pred_check_branch
      %169 = sbr.rel (0) target = $region21
    $region20: #{tpu_custom_call.1} parent=1 // pred_region
      %170 = dma.done [#allocation4], 256
    $region21: #{tpu_custom_call.1} parent=1 // pred_fallthru
      _
    %171 = vsyncpa [#allocation3], 1
    %172 = vsyncpa [#allocation4], 1

</llo_original>
